<compile_context>
chip_gen: v7x
topology: tpu7x:2x2x1
jax: 0.10.0
libtpu: 0.0.40
codegen_flags: <defaults>
</compile_context>

<pallas_src>
import jax
import jax.numpy as jnp
import numpy as np
from jax.experimental import pallas as pl
from jax.experimental.pallas import tpu as pltpu


def _classifier_listwise_kernel(lens_ref, lab_ref, h_ref, w_ref, b_ref,
                                ce_ref, ranks_ref):
    """One grid step processes rows = tb*T flattened (dialogue, utterance) rows.

    lens_ref : (rows, 1) int32   dialogue length for each row
    lab_ref  : (rows, 1) int32   utterance index (CE label) for each row
    h_ref    : (rows, H) f32/bf16 hidden states (streamed, double-buffered)
    w_ref    : (H, Cp)   bf16    clf weight, class dim padded to 128 (resident)
    b_ref    : (1, Cp)   f32     clf bias, padded (resident)
    ce_ref   : (rows, 1) f32     per-row CE, zeroed on padding rows
    ranks_ref: (rows, 1) int32   ranks = -argmax(masked logits)
    """
    rows = h_ref.shape[0]
    Cp = w_ref.shape[1]

    # ---- ClassifierHead: logits = clf(hidden); bf16 MXU matmul, f32 accum ------
    h = h_ref[...]
    if h.dtype != jnp.bfloat16:          # in-VMEM cast: no extra HBM pass
        h = h.astype(jnp.bfloat16)
    logits = jnp.dot(h, w_ref[...], preferred_element_type=jnp.float32) + b_ref[...]

    # ---- in-place class masking: logits[b, :, dia_lens[b]:] = -10000 -----------
    lens = lens_ref[...]                                   # (rows, 1) int32
    labels = lab_ref[...]                                  # (rows, 1) int32
    class_ids = jax.lax.broadcasted_iota(jnp.int32, (rows, Cp), 1)   # single iota
    logits = jnp.where(class_ids >= lens, jnp.float32(-10000.0), logits)
    # (padded classes C..Cp are also >= lens, so they are masked for free)

    # ---- ClassifierSortingLoss: CE(logits, label = utterance index) ------------
    m = jnp.max(logits, axis=-1, keepdims=True)                        # (rows, 1)
    lse = jnp.log(jnp.sum(jnp.exp(logits - m), axis=-1, keepdims=True)) + m
    label_logit = jnp.sum(jnp.where(class_ids == labels, logits, 0.0),
                          axis=-1, keepdims=True)                      # (rows, 1)
    ce = lse - label_logit
    valid = labels < lens                                              # non-padding rows
    ce_ref[...] = jnp.where(valid, ce, 0.0)

    # ---- ClassifierSortingMetric front-end: ranks = -argmax (reuse softmax max) -
    argmax = jnp.min(jnp.where(logits == m, class_ids, Cp),
                     axis=-1, keepdims=True)                # first occurrence, like argmax
    ranks_ref[...] = (-argmax).astype(jnp.int32)


# ----------------------------- tiling / budgeting --------------------------------

def _vmem_capacity_bytes():
    try:
        return int(pltpu.get_tpu_info().vmem_capacity_bytes)
    except Exception:
        return 64 * 1024 * 1024          # v7x-safe fallback (smallest VMEM/TC)


def _default_target_rows(H, in_elem_bytes, vmem_cap):
    # ~40% of VMEM for the double-buffered streamed hidden block; the rest is
    # for the (single-buffered) weight, the f32 (rows, Cp) intermediates and
    # pipeline slack.  Bigger on 128 MiB v5e/v6e, automatically tighter on v7x.
    rows = int(0.4 * vmem_cap) // max(1, 2 * H * in_elem_bytes)
    return int(max(64, min(2048, rows)))


def _pick_dialogue_tile(B, T, max_rows):
    """Largest divisor of B whose row tile fits max_rows -> never pad the input.

    Multi-tile blocks keep tb*T a multiple of 8 (sublane tiling); a single
    full-size tile is always block-legal.  Prefers >=2 tiles when the split
    tile is still large, so the 'parallel' grid axis load-balances across
    TensorCores (megacore / v7x).
    """
    best = None
    for d in range(1, B + 1):
        if B % d:
            continue
        rows = d * T
        fits = rows <= max_rows
        legal = (d == B) or (rows % 8 == 0)
        if fits and legal:
            best = d
    if best is None:
        best = B                          # full-dim single tile is always legal
    if best == B and B % 2 == 0:
        half = B // 2
        if (half * T) % 8 == 0 and 1024 <= half * T <= max_rows:
            best = half                   # 2 tiles -> both TensorCores busy
    return best


def _vmem_limit_bytes(rows, H, Cp, in_elem_bytes, vmem_cap):
    h_buf = 2 * rows * H * in_elem_bytes            # double-buffered hidden stream
    h_cast = rows * H * 2                           # in-kernel bf16 copy
    w_buf = H * Cp * 2 + Cp * 4                     # single-buffered weight + bias
    cols = 2 * 4 * rows * 4                         # lens/labels/ce/ranks buffers
    interm = 6 * rows * Cp * 4                      # f32 logits / exp / iota scratch
    need = h_buf + h_cast + w_buf + cols + interm
    limit = max(int(need * 1.25), 32 * 1024 * 1024)
    return int(min(limit, int(0.9 * vmem_cap)))


# ----------------------------------- wrapper -------------------------------------

def classifier_listwise_forward(hidden_states, w_clf, b_clf, dia_lens, *,
                                target_rows=None):
    """hidden_states: (B,T,H) (f32 or bf16 — bf16 halves the HBM stream);
    w_clf: (H,C); b_clf: (1,C) or (C,); dia_lens: (B,1) or (B,) int."""
    B, T, H = hidden_states.shape
    Hw, C = w_clf.shape
    assert Hw == H
    assert C >= T, "labels (utterance index) require max_n_uts (C) >= n utterances (T)"

    # Lane-dense class dim: pad C up to a multiple of 128 (weight/bias are tiny).
    Cp = ((C + 127) // 128) * 128
    w_p = jnp.pad(w_clf.astype(jnp.bfloat16), ((0, 0), (0, Cp - C)))
    b_p = jnp.pad(jnp.asarray(b_clf, jnp.float32).reshape(1, C), ((0, 0), (0, Cp - C)))

    # Dominant input is streamed as-is (free, layout-preserving reshape; no
    # wrapper-side convert pass).  The bf16 cast happens in VMEM in the kernel.
    h2 = hidden_states.reshape(B * T, H)
    in_elem_bytes = int(h2.dtype.itemsize)

    lens = jnp.asarray(dia_lens).reshape(B).astype(jnp.int32)
    lens_rows = jnp.broadcast_to(lens[:, None], (B, T)).reshape(B * T, 1)
    labels_rows = jnp.broadcast_to(jnp.arange(T, dtype=jnp.int32)[None, :],
                                   (B, T)).reshape(B * T, 1)

    vmem_cap = _vmem_capacity_bytes()
    if target_rows is None:
        target_rows = _default_target_rows(H, in_elem_bytes, vmem_cap)
    tb = _pick_dialogue_tile(B, T, max(target_rows, T))
    n_tiles = B // tb
    rows = tb * T
    BT = B * T

    vmem_limit = _vmem_limit_bytes(rows, H, Cp, in_elem_bytes, vmem_cap)
    cost = pl.CostEstimate(
        flops=2 * BT * H * Cp,
        transcendentals=BT * Cp + BT,                     # exp over (rows,Cp) + log per row
        bytes_accessed=(BT * H * in_elem_bytes            # hidden stream
                        + H * Cp * 2 + Cp * 4             # weight + bias
                        + BT * 2 * 4                      # lens + labels
                        + BT * (4 + 4)),                  # ce + ranks outputs
    )

    def make_call(weight_kwargs):
        in_specs = [
            pl.BlockSpec((rows, 1), lambda i: (i, 0)),     # per-row dialogue length
            pl.BlockSpec((rows, 1), lambda i: (i, 0)),     # per-row label (utterance idx)
            pl.BlockSpec((rows, H), lambda i: (i, 0)),     # streamed hidden rows
            pl.BlockSpec((H, Cp), lambda i: (0, 0), **weight_kwargs),   # resident weight
            pl.BlockSpec((1, Cp), lambda i: (0, 0), **weight_kwargs),   # resident bias
        ]
        out_specs = (
            pl.BlockSpec((rows, 1), lambda i: (i, 0)),     # per-row CE (masked)
            pl.BlockSpec((rows, 1), lambda i: (i, 0)),     # per-row rank
        )
        return pl.pallas_call(
            _classifier_listwise_kernel,
            grid=(n_tiles,),
            in_specs=in_specs,
            out_specs=out_specs,
            out_shape=(
                jax.ShapeDtypeStruct((BT, 1), jnp.float32),
                jax.ShapeDtypeStruct((BT, 1), jnp.int32),
            ),
            compiler_params=pltpu.CompilerParams(
                dimension_semantics=("parallel",),         # disjoint tiles -> megacore-safe
                vmem_limit_bytes=vmem_limit,
            ),
            cost_estimate=cost,
        )

    try:
        # Constant index_map -> the resident weight/bias never need double
        # buffering; Buffered(1) halves their VMEM footprint (matters on v7x).
        ce_col, ranks_col = make_call(
            dict(pipeline_mode=pl.Buffered(buffer_count=1)))(
                lens_rows, labels_rows, h2, w_p, b_p)
    except Exception:
        # Older jax builds without per-BlockSpec pipeline_mode: default buffering.
        ce_col, ranks_col = make_call({})(lens_rows, labels_rows, h2, w_p, b_p)

    valid = (labels_rows < lens_rows).astype(jnp.float32)
    loss = jnp.sum(ce_col) / jnp.maximum(jnp.sum(valid), 1.0)
    ranks = ranks_col.reshape(B, T)
    return loss, ranks


# ---------------------------------- reference ------------------------------------

def _reference(hidden_states, w_clf, b_clf, dia_lens):
    """Pure-JAX reference mirroring the PyTorch semantics (same bf16 matmul inputs)."""
    B, T, H = hidden_states.shape
    C = w_clf.shape[1]
    h = hidden_states.astype(jnp.bfloat16)
    w = w_clf.astype(jnp.bfloat16)
    logits = jnp.einsum("bth,hc->btc", h, w,
                        preferred_element_type=jnp.float32) + b_clf.astype(jnp.float32)
    cls = jnp.arange(C)[None, None, :]
    logits = jnp.where(cls >= dia_lens[:, :, None], -10000.0, logits)
    logp = jax.nn.log_softmax(logits, axis=-1)
    labels = jnp.arange(T)
    ce = -jnp.take_along_axis(logp, labels[None, :, None], axis=-1)[..., 0]   # (B,T)
    valid = (jnp.arange(T)[None, :] < dia_lens).astype(jnp.float32)
    loss = jnp.sum(ce * valid) / jnp.maximum(jnp.sum(valid), 1.0)
    ranks = -jnp.argmax(logits, axis=-1).astype(jnp.int32)
    return loss, ranks


if __name__ == "__main__":
    # Small shapes consistent with the module: B dialogues, T utterances,
    # hidden size H, max_n_uts classes (C >= T).
    B, T, H, C = 2, 8, 32, 8
    key = jax.random.PRNGKey(0)
    k_h, k_w, k_b = jax.random.split(key, 3)

    # hidden states produced by the (external) dialogue model
    hidden_states = jax.random.normal(k_h, (B, T, H), dtype=jnp.float32)

    # deterministic ClassifierHead.clf params (PyTorch Linear-style uniform init)
    bound = 1.0 / np.sqrt(H)
    w_clf = jax.random.uniform(k_w, (H, C), jnp.float32, -bound, bound)
    b_clf = jax.random.uniform(k_b, (1, C), jnp.float32, -bound, bound)

    # dialogue lengths (number of utterances per dialogue); T = max length
    dia_lens = jnp.array([[8], [5]], dtype=jnp.int32)          # (B, 1)

    loss, ranks = classifier_listwise_forward(hidden_states, w_clf, b_clf, dia_lens)
    jax.block_until_ready((loss, ranks))

    ref_loss, ref_ranks = _reference(hidden_states, w_clf, b_clf, dia_lens)
    assert np.allclose(np.asarray(loss), np.asarray(ref_loss), rtol=1e-4, atol=1e-4), (
        float(loss), float(ref_loss))
    assert np.array_equal(np.asarray(ranks), np.asarray(ref_ranks)), (ranks, ref_ranks)

    print("KERNEL_OK")
</pallas_src>

<mosaic_0001>
module attributes {stable_mosaic.version = 11 : i64} {
  func.func @_classifier_listwise_kernel(%arg0: i32, %arg1: memref<16x1xi32, #tpu.memory_space<vmem>>, %arg2: memref<16x1xi32, #tpu.memory_space<vmem>>, %arg3: memref<16x32xf32, #tpu.memory_space<vmem>>, %arg4: memref<32x128xbf16, #tpu.memory_space<vmem>>, %arg5: memref<1x128xf32, #tpu.memory_space<vmem>>, %arg6: memref<16x1xf32, #tpu.memory_space<vmem>>, %arg7: memref<16x1xi32, #tpu.memory_space<vmem>>) attributes {dimension_semantics = [#tpu.dimension_semantics<parallel>], iteration_bounds = array<i64: 1>, scalar_prefetch = 0 : i64, scratch_operands = 0 : i64, tpu.core_type = #tpu.core_type<tc>, window_params = [{transform_indices = @transform_0, window_bounds = array<i64: 16, 1>}, {transform_indices = @transform_1, window_bounds = array<i64: 16, 1>}, {transform_indices = @transform_2, window_bounds = array<i64: 16, 32>}, {pipeline_mode = #tpu.pipeline_mode<synchronous>, transform_indices = @transform_3, window_bounds = array<i64: 32, 128>}, {pipeline_mode = #tpu.pipeline_mode<synchronous>, transform_indices = @transform_4, window_bounds = array<i64: 1, 128>}, {transform_indices = @transform_5, window_bounds = array<i64: 16, 1>}, {transform_indices = @transform_6, window_bounds = array<i64: 16, 1>}]} {
    %c0 = arith.constant 0 : index
    %c0_0 = arith.constant 0 : index
    %0 = vector.load %arg3[%c0, %c0_0] : memref<16x32xf32, #tpu.memory_space<vmem>>, vector<16x32xf32>
    %1 = arith.truncf %0 : vector<16x32xf32> to vector<16x32xbf16>
    %c0_1 = arith.constant 0 : index
    %c0_2 = arith.constant 0 : index
    %2 = vector.load %arg4[%c0_1, %c0_2] : memref<32x128xbf16, #tpu.memory_space<vmem>>, vector<32x128xbf16>
    %cst = arith.constant dense<0.000000e+00> : vector<16x128xf32>
    %3 = tpu.matmul %1, %2, %cst {dimension_numbers = #tpu.dot_dimension_numbers<[1], [0], [0], [1], [0, 0, 1, 1], [], []>} : vector<16x32xbf16>, vector<32x128xbf16>, vector<16x128xf32> -> vector<16x128xf32>
    %c0_3 = arith.constant 0 : index
    %c0_4 = arith.constant 0 : index
    %4 = vector.load %arg5[%c0_3, %c0_4] : memref<1x128xf32, #tpu.memory_space<vmem>>, vector<1x128xf32>
    %5 = vector.broadcast %4 : vector<1x128xf32> to vector<16x128xf32>
    %6 = arith.addf %3, %5 : vector<16x128xf32>
    %c0_5 = arith.constant 0 : index
    %c0_6 = arith.constant 0 : index
    %7 = vector.load %arg1[%c0_5, %c0_6] : memref<16x1xi32, #tpu.memory_space<vmem>>, vector<16x1xi32>
    %c0_7 = arith.constant 0 : index
    %c0_8 = arith.constant 0 : index
    %8 = vector.load %arg2[%c0_7, %c0_8] : memref<16x1xi32, #tpu.memory_space<vmem>>, vector<16x1xi32>
    %9 = tpu.iota {dimensions = array<i32: 1>} : vector<16x128xi32>
    %10 = vector.broadcast %7 : vector<16x1xi32> to vector<16x128xi32>
    %11 = arith.cmpi sge, %9, %10 : vector<16x128xi32>
    %cst_9 = arith.constant -1.000000e+04 : f32
    %12 = vector.broadcast %cst_9 : f32 to vector<16x128xf32>
    %13 = arith.select %11, %12, %6 : vector<16x128xi1>, vector<16x128xf32>
    %cst_10 = arith.constant dense<0xFF800000> : vector<16xf32>
    %14 = vector.multi_reduction <maximumf>, %13, %cst_10 [1] : vector<16x128xf32> to vector<16xf32>
    %15 = vector.shape_cast %14 : vector<16xf32> to vector<16x1xf32>
    %16 = vector.broadcast %15 : vector<16x1xf32> to vector<16x128xf32>
    %17 = arith.subf %13, %16 : vector<16x128xf32>
    %18 = math.exp %17 : vector<16x128xf32>
    %cst_11 = arith.constant dense<0.000000e+00> : vector<16xf32>
    %19 = vector.multi_reduction <add>, %18, %cst_11 [1] : vector<16x128xf32> to vector<16xf32>
    %20 = vector.shape_cast %19 : vector<16xf32> to vector<16x1xf32>
    %21 = math.log %20 : vector<16x1xf32>
    %22 = arith.addf %21, %15 : vector<16x1xf32>
    %23 = vector.broadcast %8 : vector<16x1xi32> to vector<16x128xi32>
    %24 = arith.cmpi eq, %9, %23 : vector<16x128xi32>
    %cst_12 = arith.constant 0.000000e+00 : f32
    %25 = vector.broadcast %cst_12 : f32 to vector<16x128xf32>
    %26 = arith.select %24, %13, %25 : vector<16x128xi1>, vector<16x128xf32>
    %cst_13 = arith.constant dense<0.000000e+00> : vector<16xf32>
    %27 = vector.multi_reduction <add>, %26, %cst_13 [1] : vector<16x128xf32> to vector<16xf32>
    %28 = vector.shape_cast %27 : vector<16xf32> to vector<16x1xf32>
    %29 = arith.subf %22, %28 : vector<16x1xf32>
    %30 = arith.cmpi slt, %8, %7 : vector<16x1xi32>
    %cst_14 = arith.constant 0.000000e+00 : f32
    %31 = vector.broadcast %cst_14 : f32 to vector<16x1xf32>
    %32 = arith.select %30, %29, %31 : vector<16x1xi1>, vector<16x1xf32>
    %c0_15 = arith.constant 0 : index
    %c0_16 = arith.constant 0 : index
    %33 = vector.load %arg6[%c0_15, %c0_16] : memref<16x1xf32, #tpu.memory_space<vmem>>, vector<16x1xf32>
    tpu.vector_store %arg6[%c0_15, %c0_16], %32 {strides = array<i32>} : memref<16x1xf32, #tpu.memory_space<vmem>>, vector<16x1xf32>,
    %34 = vector.broadcast %15 : vector<16x1xf32> to vector<16x128xf32>
    %35 = arith.cmpf oeq, %13, %34 : vector<16x128xf32>
    %c128_i32 = arith.constant 128 : i32
    %36 = vector.broadcast %c128_i32 : i32 to vector<16x128xi32>
    %37 = arith.select %35, %9, %36 : vector<16x128xi1>, vector<16x128xi32>
    %cst_17 = arith.constant dense<2147483647> : vector<16xi32>
    %38 = vector.multi_reduction <minsi>, %37, %cst_17 [1] : vector<16x128xi32> to vector<16xi32>
    %39 = vector.shape_cast %38 : vector<16xi32> to vector<16x1xi32>
    %c0_i32 = arith.constant 0 : i32
    %40 = vector.broadcast %c0_i32 : i32 to vector<16x1xi32>
    %41 = arith.subi %40, %39 : vector<16x1xi32>
    %c0_18 = arith.constant 0 : index
    %c0_19 = arith.constant 0 : index
    %42 = vector.load %arg7[%c0_18, %c0_19] : memref<16x1xi32, #tpu.memory_space<vmem>>, vector<16x1xi32>
    tpu.vector_store %arg7[%c0_18, %c0_19], %41 {strides = array<i32>} : memref<16x1xi32, #tpu.memory_space<vmem>>, vector<16x1xi32>,
    return
  }
  func.func @transform_0(%arg0: i32) -> (i32, i32) {
    %c0_i32 = arith.constant 0 : i32
    %c0_i32_0 = arith.constant 0 : i32
    return %arg0, %c0_i32 : i32, i32
  }
  func.func @transform_1(%arg0: i32) -> (i32, i32) {
    %c0_i32 = arith.constant 0 : i32
    %c0_i32_0 = arith.constant 0 : i32
    return %arg0, %c0_i32 : i32, i32
  }
  func.func @transform_2(%arg0: i32) -> (i32, i32) {
    %c0_i32 = arith.constant 0 : i32
    %c0_i32_0 = arith.constant 0 : i32
    return %arg0, %c0_i32 : i32, i32
  }
  func.func @transform_3(%arg0: i32) -> (i32, i32) {
    %c0_i32 = arith.constant 0 : i32
    %c0_i32_0 = arith.constant 0 : i32
    %c0_i32_1 = arith.constant 0 : i32
    return %c0_i32, %c0_i32_0 : i32, i32
  }
  func.func @transform_4(%arg0: i32) -> (i32, i32) {
    %c0_i32 = arith.constant 0 : i32
    %c0_i32_0 = arith.constant 0 : i32
    %c0_i32_1 = arith.constant 0 : i32
    return %c0_i32, %c0_i32_0 : i32, i32
  }
  func.func @transform_5(%arg0: i32) -> (i32, i32) {
    %c0_i32 = arith.constant 0 : i32
    %c0_i32_0 = arith.constant 0 : i32
    return %arg0, %c0_i32 : i32, i32
  }
  func.func @transform_6(%arg0: i32) -> (i32, i32) {
    %c0_i32 = arith.constant 0 : i32
    %c0_i32_0 = arith.constant 0 : i32
    return %arg0, %c0_i32 : i32, i32
  }
}

module attributes {stable_mosaic.version = 11 : i64} {
  func.func @_classifier_listwise_kernel(%arg0: i32, %arg1: memref<16x1xi32, #tpu.memory_space<vmem>>, %arg2: memref<16x1xi32, #tpu.memory_space<vmem>>, %arg3: memref<16x32xf32, #tpu.memory_space<vmem>>, %arg4: memref<32x128xbf16, #tpu.memory_space<vmem>>, %arg5: memref<1x128xf32, #tpu.memory_space<vmem>>, %arg6: memref<16x1xf32, #tpu.memory_space<vmem>>, %arg7: memref<16x1xi32, #tpu.memory_space<vmem>>) attributes {dimension_semantics = [#tpu.dimension_semantics<parallel>], iteration_bounds = array<i64: 1>, scalar_prefetch = 0 : i64, scratch_operands = 0 : i64, tpu.core_type = #tpu.core_type<tc>, window_params = [{transform_indices = @transform_0, window_bounds = array<i64: 16, 1>}, {transform_indices = @transform_1, window_bounds = array<i64: 16, 1>}, {transform_indices = @transform_2, window_bounds = array<i64: 16, 32>}, {pipeline_mode = #tpu.pipeline_mode<synchronous>, transform_indices = @transform_3, window_bounds = array<i64: 32, 128>}, {pipeline_mode = #tpu.pipeline_mode<synchronous>, transform_indices = @transform_4, window_bounds = array<i64: 1, 128>}, {transform_indices = @transform_5, window_bounds = array<i64: 16, 1>}, {transform_indices = @transform_6, window_bounds = array<i64: 16, 1>}]} {
    %c0 = arith.constant 0 : index
    %c0_0 = arith.constant 0 : index
    %0 = vector.load %arg3[%c0, %c0_0] : memref<16x32xf32, #tpu.memory_space<vmem>>, vector<16x32xf32>
    %1 = arith.truncf %0 : vector<16x32xf32> to vector<16x32xbf16>
    %c0_1 = arith.constant 0 : index
    %c0_2 = arith.constant 0 : index
    %2 = vector.load %arg4[%c0_1, %c0_2] : memref<32x128xbf16, #tpu.memory_space<vmem>>, vector<32x128xbf16>
    %cst = arith.constant dense<0.000000e+00> : vector<16x128xf32>
    %3 = tpu.matmul %1, %2, %cst {dimension_numbers = #tpu.dot_dimension_numbers<[1], [0], [0], [1], [0, 0, 1, 1], [], []>} : vector<16x32xbf16>, vector<32x128xbf16>, vector<16x128xf32> -> vector<16x128xf32>
    %c0_3 = arith.constant 0 : index
    %c0_4 = arith.constant 0 : index
    %4 = vector.load %arg5[%c0_3, %c0_4] : memref<1x128xf32, #tpu.memory_space<vmem>>, vector<1x128xf32>
    %5 = vector.broadcast %4 : vector<1x128xf32> to vector<16x128xf32>
    %6 = arith.addf %3, %5 : vector<16x128xf32>
    %c0_5 = arith.constant 0 : index
    %c0_6 = arith.constant 0 : index
    %7 = vector.load %arg1[%c0_5, %c0_6] : memref<16x1xi32, #tpu.memory_space<vmem>>, vector<16x1xi32>
    %c0_7 = arith.constant 0 : index
    %c0_8 = arith.constant 0 : index
    %8 = vector.load %arg2[%c0_7, %c0_8] : memref<16x1xi32, #tpu.memory_space<vmem>>, vector<16x1xi32>
    %9 = tpu.iota {dimensions = array<i32: 1>} : vector<16x128xi32>
    %10 = vector.broadcast %7 : vector<16x1xi32> to vector<16x128xi32>
    %11 = arith.cmpi sge, %9, %10 : vector<16x128xi32>
    %cst_9 = arith.constant -1.000000e+04 : f32
    %12 = vector.broadcast %cst_9 : f32 to vector<16x128xf32>
    %13 = arith.select %11, %12, %6 : vector<16x128xi1>, vector<16x128xf32>
    %cst_10 = arith.constant dense<0xFF800000> : vector<16xf32>
    %14 = vector.multi_reduction <maximumf>, %13, %cst_10 [1] : vector<16x128xf32> to vector<16xf32>
    %15 = vector.shape_cast %14 : vector<16xf32> to vector<16x1xf32>
    %16 = vector.broadcast %15 : vector<16x1xf32> to vector<16x128xf32>
    %17 = arith.subf %13, %16 : vector<16x128xf32>
    %18 = math.exp %17 : vector<16x128xf32>
    %cst_11 = arith.constant dense<0.000000e+00> : vector<16xf32>
    %19 = vector.multi_reduction <add>, %18, %cst_11 [1] : vector<16x128xf32> to vector<16xf32>
    %20 = vector.shape_cast %19 : vector<16xf32> to vector<16x1xf32>
    %21 = math.log %20 : vector<16x1xf32>
    %22 = arith.addf %21, %15 : vector<16x1xf32>
    %23 = vector.broadcast %8 : vector<16x1xi32> to vector<16x128xi32>
    %24 = arith.cmpi eq, %9, %23 : vector<16x128xi32>
    %cst_12 = arith.constant 0.000000e+00 : f32
    %25 = vector.broadcast %cst_12 : f32 to vector<16x128xf32>
    %26 = arith.select %24, %13, %25 : vector<16x128xi1>, vector<16x128xf32>
    %cst_13 = arith.constant dense<0.000000e+00> : vector<16xf32>
    %27 = vector.multi_reduction <add>, %26, %cst_13 [1] : vector<16x128xf32> to vector<16xf32>
    %28 = vector.shape_cast %27 : vector<16xf32> to vector<16x1xf32>
    %29 = arith.subf %22, %28 : vector<16x1xf32>
    %30 = arith.cmpi slt, %8, %7 : vector<16x1xi32>
    %cst_14 = arith.constant 0.000000e+00 : f32
    %31 = vector.broadcast %cst_14 : f32 to vector<16x1xf32>
    %32 = arith.select %30, %29, %31 : vector<16x1xi1>, vector<16x1xf32>
    %c0_15 = arith.constant 0 : index
    %c0_16 = arith.constant 0 : index
    %33 = vector.load %arg6[%c0_15, %c0_16] : memref<16x1xf32, #tpu.memory_space<vmem>>, vector<16x1xf32>
    tpu.vector_store %arg6[%c0_15, %c0_16], %32 {strides = array<i32>} : memref<16x1xf32, #tpu.memory_space<vmem>>, vector<16x1xf32>,
    %34 = vector.broadcast %15 : vector<16x1xf32> to vector<16x128xf32>
    %35 = arith.cmpf oeq, %13, %34 : vector<16x128xf32>
    %c128_i32 = arith.constant 128 : i32
    %36 = vector.broadcast %c128_i32 : i32 to vector<16x128xi32>
    %37 = arith.select %35, %9, %36 : vector<16x128xi1>, vector<16x128xi32>
    %cst_17 = arith.constant dense<2147483647> : vector<16xi32>
    %38 = vector.multi_reduction <minsi>, %37, %cst_17 [1] : vector<16x128xi32> to vector<16xi32>
    %39 = vector.shape_cast %38 : vector<16xi32> to vector<16x1xi32>
    %c0_i32 = arith.constant 0 : i32
    %40 = vector.broadcast %c0_i32 : i32 to vector<16x1xi32>
    %41 = arith.subi %40, %39 : vector<16x1xi32>
    %c0_18 = arith.constant 0 : index
    %c0_19 = arith.constant 0 : index
    %42 = vector.load %arg7[%c0_18, %c0_19] : memref<16x1xi32, #tpu.memory_space<vmem>>, vector<16x1xi32>
    tpu.vector_store %arg7[%c0_18, %c0_19], %41 {strides = array<i32>} : memref<16x1xi32, #tpu.memory_space<vmem>>, vector<16x1xi32>,
    return
  }
  func.func @transform_0(%arg0: i32) -> (i32, i32) {
    %c0_i32 = arith.constant 0 : i32
    %c0_i32_0 = arith.constant 0 : i32
    return %arg0, %c0_i32 : i32, i32
  }
  func.func @transform_1(%arg0: i32) -> (i32, i32) {
    %c0_i32 = arith.constant 0 : i32
    %c0_i32_0 = arith.constant 0 : i32
    return %arg0, %c0_i32 : i32, i32
  }
  func.func @transform_2(%arg0: i32) -> (i32, i32) {
    %c0_i32 = arith.constant 0 : i32
    %c0_i32_0 = arith.constant 0 : i32
    return %arg0, %c0_i32 : i32, i32
  }
  func.func @transform_3(%arg0: i32) -> (i32, i32) {
    %c0_i32 = arith.constant 0 : i32
    %c0_i32_0 = arith.constant 0 : i32
    %c0_i32_1 = arith.constant 0 : i32
    return %c0_i32, %c0_i32_0 : i32, i32
  }
  func.func @transform_4(%arg0: i32) -> (i32, i32) {
    %c0_i32 = arith.constant 0 : i32
    %c0_i32_0 = arith.constant 0 : i32
    %c0_i32_1 = arith.constant 0 : i32
    return %c0_i32, %c0_i32_0 : i32, i32
  }
  func.func @transform_5(%arg0: i32) -> (i32, i32) {
    %c0_i32 = arith.constant 0 : i32
    %c0_i32_0 = arith.constant 0 : i32
    return %arg0, %c0_i32 : i32, i32
  }
  func.func @transform_6(%arg0: i32) -> (i32, i32) {
    %c0_i32 = arith.constant 0 : i32
    %c0_i32_0 = arith.constant 0 : i32
    return %arg0, %c0_i32 : i32, i32
  }
}

</mosaic_0001>

<llo_original>
// kernel: tpu_custom_call.1
$region0: #{tpu_custom_call.1}
  #allocation0 [shape = 'u32[]', space=smem, size = 0x4, offset = 0x4, fixed_abs, tag = 'smem constant byte address 0x4 - core index']
  #allocation1 [shape = 'u32[144,128]{1,0:T(1,128)}', space=vmem, size = 0x12000, scoped, tag = 'internal scratch']
  %s0 = inlined_call_operand.vmem [shape: s32[16,1], index: 0, kind: input, shape index: {}]
  %s1 = inlined_call_operand.vmem [shape: s32[16,1], index: 1, kind: input, shape index: {}]
  %s2 = inlined_call_operand.vmem [shape: f32[16,32], index: 2, kind: input, shape index: {}]
  %s3 = inlined_call_operand.vmem [shape: bf16[32,128], index: 3, kind: input, shape index: {}]
  %s4 = inlined_call_operand.vmem [shape: f32[1,128], index: 4, kind: input, shape index: {}]
  %s5 = inlined_call_operand.vmem [shape: f32[16,1], index: 5, kind: output, shape index: {0}]
  %s6 = inlined_call_operand.vmem [shape: s32[16,1], index: 6, kind: output, shape index: {1}]
  %7 = xla_tuple %s5, %s6
  %s8 = sld [smem:[#allocation0]]
  $region38: #{tpu_custom_call.1} parent=0
    _
  %s10 = ssub.s32 1, %s8
  %s11 = scalar_select 0, %s10, %s8
  // Predicated region
  $region2: #{tpu_custom_call.1} parent=0 // pred_check
    _
  $region3: #{tpu_custom_call.1} parent=0 // pred_check_branch
    %13 = sbr.rel (0) target = $region5
  $region4: #{tpu_custom_call.1} parent=0 // pred_region
    _
  $region5: #{tpu_custom_call.1} parent=0 // pred_fallthru
    _
  // Predicated region
  $region6: #{tpu_custom_call.1} parent=0 // pred_check
    _
  $region7: #{tpu_custom_call.1} parent=0 // pred_check_branch
    %15 = sbr.rel (0) target = $region9
  $region8: #{tpu_custom_call.1} parent=0 // pred_region
    _
  $region9: #{tpu_custom_call.1} parent=0 // pred_fallthru
    _
  // Predicated region
  $region10: #{tpu_custom_call.1} parent=0 // pred_check
    _
  $region11: #{tpu_custom_call.1} parent=0 // pred_check_branch
    %17 = sbr.rel (0) target = $region13
  $region12: #{tpu_custom_call.1} parent=0 // pred_region
    _
  $region13: #{tpu_custom_call.1} parent=0 // pred_fallthru
    _
  // Predicated region
  $region14: #{tpu_custom_call.1} parent=0 // pred_check
    _
  $region15: #{tpu_custom_call.1} parent=0 // pred_check_branch
    %19 = sbr.rel (0) target = $region17
  $region16: #{tpu_custom_call.1} parent=0 // pred_region
    _
  $region17: #{tpu_custom_call.1} parent=0 // pred_fallthru
    _
  // Predicated region
  $region18: #{tpu_custom_call.1} parent=0 // pred_check
    _
  $region19: #{tpu_custom_call.1} parent=0 // pred_check_branch
    %21 = sbr.rel (0) target = $region21
  $region20: #{tpu_custom_call.1} parent=0 // pred_region
    _
  $region21: #{tpu_custom_call.1} parent=0 // pred_fallthru
    _
  %v23 = vld [vmem:[%s2] sm:$0xff]
  %v24 = vld [vmem:[%s2 + $0x8] sm:$0xff]
  %v25 = vpack.c.bf16 %v24, %v23
  %v26 = vld [vmem:[%s3] sm:$0xf]
  %v27 = vld [vmem:[%s3 + $0x4] sm:$0xf]
  %v28 = vld [vmem:[%s3 + $0x8] sm:$0xf]
  %v29 = vld [vmem:[%s3 + $0xc] sm:$0xf]
  %v30 = vld [vmem:[%s4] sm:$0x1]
  %v32 = vlaneseq
  %v33 = vshrl.u32 %v32, 7
  %v34 = vsub.s32 0, %v33
  %v35 = vrot.slane %v30, %v34
  %v41 = vunpack.c.l.b16 %v26
  %v42 = vunpack.c.l.b16 %v27
  %v43 = vunpack.c.l.b16 %v28
  %v44 = vunpack.c.l.b16 %v29
  %v45 = vpack.c.b16 %v42, %v41
  %v46 = vpack.c.b16 %v44, %v43
  %vm49 = vcmask 261120
  %v51 = vsel %vm49, %v25, 0
  %53 = vmatprep.subr.bf16.mxu0 0
  %54 = vmatpush1.bf16.msra.mxu0 %v45
  %55 = vmatprep.subr.bf16.mxu0 0
  %56 = vmatpush1.bf16.msra.mxu0 %v46
  %57 = vmatprep.subr.bf16.mxu0 0
  %58 = vmatpush1.bf16.msra.mxu0 0
  %59 = vmatprep.subr.bf16.mxu0 0
  %60 = vmatpush1.bf16.msra.mxu0 0
  %61 = vmatprep.subr.bf16.mxu0 0
  %62 = vmatpush1.bf16.msra.mxu0 0
  %63 = vmatprep.subr.bf16.mxu0 0
  %64 = vmatpush1.bf16.msra.mxu0 0
  %65 = vmatprep.subr.bf16.mxu0 0
  %66 = vmatpush1.bf16.msra.mxu0 0
  %67 = vmatprep.subr.bf16.mxu0 0
  %68 = vmatpush1.bf16.msra.mxu0 0
  %69 = vmatprep.subr.bf16.mxu0 0
  %70 = vmatpush1.bf16.msra.mxu0 0
  %71 = vmatprep.subr.bf16.mxu0 0
  %72 = vmatpush1.bf16.msra.mxu0 0
  %73 = vmatprep.subr.bf16.mxu0 0
  %74 = vmatpush1.bf16.msra.mxu0 0
  %75 = vmatprep.subr.bf16.mxu0 0
  %76 = vmatpush1.bf16.msra.mxu0 0
  %77 = vmatprep.subr.bf16.mxu0 0
  %78 = vmatpush1.bf16.msra.mxu0 0
  %79 = vmatprep.subr.bf16.mxu0 0
  %80 = vmatpush1.bf16.msra.mxu0 0
  %81 = vmatprep.subr.bf16.mxu0 0
  %82 = vmatpush1.bf16.msra.mxu0 0
  %83 = vmatprep.subr.bf16.mxu0 0
  %84 = vmatpush1.bf16.msra.mxu0 0
  %85 = vmatprep.mubr.bf16.mxu0 0
  %86 = vmatmul.mubr.bf16.gmra.mrb[0].mxu0 %v51
  %v87 = vpop.f32.mrb[0].mxu0
  %v88 = vadd.f32 %v35, %v87
  %v89 = vpop.f32.mrb[0].mxu0
  %v90 = vpop.f32.mrb[0].mxu0
  %v91 = vadd.f32 %v35, %v90
  %v92 = vpop.f32.mrb[0].mxu0
  %93 = vdwg.mxu0
  %v94 = vld [vmem:[%s0] sm:$0xff]
  %v95 = vld [vmem:[%s0 + $0x8] sm:$0xff]
  %v96 = vld [vmem:[%s1] sm:$0xff]
  %v97 = vld [vmem:[%s1 + $0x8] sm:$0xff]
  %v98 = vlaneseq
  %v99 = vand.u32 %v98, 127
  %100 = vset.pattern.permute.xlu0 0
  %101 = vperm.xlu0 %100, %v94
  %v102 = vpop.permute.xlu0 %101
  %103 = vset.pattern.permute.xlu0 0
  %104 = vperm.xlu0 %103, %v95
  %v105 = vpop.permute.xlu0 %104
  %vm106 = vcmp.ge.s32.totalorder %v99, %v102
  %vm107 = vcmp.ge.s32.totalorder %v99, %v105
  %v108 = vsel %vm106, -10000.0, %v88
  %v109 = vsel %vm107, -10000.0, %v91
  %110 = vmax.xlane.f32.xlu0 %v108
  %v111 = vpop.xlane.xlu0 %110
  %112 = vmax.xlane.f32.xlu0 %v109
  %v113 = vpop.xlane.xlu0 %112
  %v114 = vsub.f32 %v108, %v111
  %v115 = vsub.f32 %v109, %v113
  %v116 = vmul.f32 %v114, 1.442695
  %v117 = vpow.pop %v116
  %v118 = vmul.f32 %v115, 1.442695
  %v119 = vpow.pop %v118
  %120 = vadd.xlane.f32.xlu0 %v117
  %v121 = vpop.xlane.xlu0 %120
  %122 = vadd.xlane.f32.xlu0 %v119
  %v123 = vpop.xlane.xlu0 %122
  %v124 = vlog2.pop %v121
  %v125 = vmul.f32 %v124, 0.6931472
  %v126 = vlog2.pop %v123
  %v127 = vmul.f32 %v126, 0.6931472
  %v128 = vadd.f32 %v125, %v111
  %v129 = vadd.f32 %v127, %v113
  %130 = vset.pattern.permute.xlu0 0
  %131 = vperm.xlu0 %130, %v96
  %v132 = vpop.permute.xlu0 %131
  %133 = vset.pattern.permute.xlu0 0
  %134 = vperm.xlu0 %133, %v97
  %v135 = vpop.permute.xlu0 %134
  %vm136 = vcmp.eq.s32.totalorder %v99, %v132
  %vm137 = vcmp.eq.s32.totalorder %v99, %v135
  %v138 = vsel %vm136, %v108, 0.0
  %v139 = vsel %vm137, %v109, 0.0
  %140 = vadd.xlane.f32.xlu0 %v138
  %v141 = vpop.xlane.xlu0 %140
  %142 = vadd.xlane.f32.xlu0 %v139
  %v143 = vpop.xlane.xlu0 %142
  %v144 = vsub.f32 %v128, %v141
  %v145 = vsub.f32 %v129, %v143
  %vm146 = vcmp.lt.s32.totalorder %v96, %v94
  %vm147 = vcmp.lt.s32.totalorder %v97, %v95
  %v148 = vsel %vm146, %v144, 0.0
  %v149 = vsel %vm147, %v145, 0.0
  %vm150 = vcmask 7168
  %151 = vst.msk [vmem:[%s5] sm:$0xff] %vm150, %v148
  %152 = vst.msk [vmem:[%s5 + $0x8] sm:$0xff] %vm150, %v149
  %vm153 = vcmp.eq.f32.partialorder %v108, %v111
  %vm154 = vcmp.eq.f32.partialorder %v109, %v113
  %v155 = vsel %vm153, %v99, 128
  %v156 = vsel %vm154, %v99, 128
  %v157 = vand.u32 %v155, 65535
  %v158 = vshra.s32 %v155, 16
  %v159 = vcvt.s32.f32 %v157
  %v160 = vcvt.s32.f32 %v158
  %161 = vmin.xlane.f32.xlu0 %v160
  %v162 = vpop.xlane.xlu0 %161
  %vm163 = vcmp.eq.f32.partialorder %v160, %v162
  %v164 = vsel %vm163, %v159, inf
  %165 = vmin.xlane.f32.xlu0 %v164
  %v166 = vpop.xlane.xlu0 %165
  %v167 = vcvt.f32.s32 %v166
  %v168 = vcvt.f32.s32 %v162
  %v169 = vshll.u32 %v168, 16
  %v170 = vadd.s32 %v169, %v167
  %v171 = vand.u32 %v156, 65535
  %v172 = vshra.s32 %v156, 16
  %v173 = vcvt.s32.f32 %v171
  %v174 = vcvt.s32.f32 %v172
  %175 = vmin.xlane.f32.xlu0 %v174
  %v176 = vpop.xlane.xlu0 %175
  %vm177 = vcmp.eq.f32.partialorder %v174, %v176
  %v178 = vsel %vm177, %v173, inf
  %179 = vmin.xlane.f32.xlu0 %v178
  %v180 = vpop.xlane.xlu0 %179
  %v181 = vcvt.f32.s32 %v180
  %v182 = vcvt.f32.s32 %v176
  %v183 = vshll.u32 %v182, 16
  %v184 = vadd.s32 %v183, %v181
  %v185 = vsub.s32 0, %v170
  %v186 = vsub.s32 0, %v184
  %187 = vst.msk [vmem:[%s6] sm:$0xff] %vm150, %v185
  %188 = vst.msk [vmem:[%s6 + $0x8] sm:$0xff] %vm150, %v186
  // Predicated region
  $region22: #{tpu_custom_call.1} parent=0 // pred_check
    _
  $region23: #{tpu_custom_call.1} parent=0 // pred_check_branch
    %190 = sbr.rel (0) target = $region25
  $region24: #{tpu_custom_call.1} parent=0 // pred_region
    _
  $region25: #{tpu_custom_call.1} parent=0 // pred_fallthru
    _
  // Predicated region
  $region26: #{tpu_custom_call.1} parent=0 // pred_check
    _
  $region27: #{tpu_custom_call.1} parent=0 // pred_check_branch
    %192 = sbr.rel (0) target = $region29
  $region28: #{tpu_custom_call.1} parent=0 // pred_region
    _
  $region29: #{tpu_custom_call.1} parent=0 // pred_fallthru
    _
  // Predicated region
  $region30: #{tpu_custom_call.1} parent=0 // pred_check
    _
  $region31: #{tpu_custom_call.1} parent=0 // pred_check_branch
    %194 = sbr.rel (0) target = $region33
  $region32: #{tpu_custom_call.1} parent=0 // pred_region
    _
  $region33: #{tpu_custom_call.1} parent=0 // pred_fallthru
    _
  // Predicated region
  $region34: #{tpu_custom_call.1} parent=0 // pred_check
    _
  $region35: #{tpu_custom_call.1} parent=0 // pred_check_branch
    %196 = sbr.rel (0) target = $region37
  $region36: #{tpu_custom_call.1} parent=0 // pred_region
    _
  $region37: #{tpu_custom_call.1} parent=0 // pred_fallthru
    _

// kernel: tpu_custom_call.1
$region0: #{tpu_custom_call.1}
  #allocation0 [shape = 'u32[]', space=smem, size = 0x4, offset = 0x4, fixed_abs, tag = 'smem constant byte address 0x4 - core index']
  #allocation1 [shape = 'u32[144,128]{1,0:T(1,128)}', space=vmem, size = 0x12000, scoped, tag = 'internal scratch']
  %s0 = inlined_call_operand.vmem [shape: s32[16,1], index: 0, kind: input, shape index: {}]
  %s1 = inlined_call_operand.vmem [shape: s32[16,1], index: 1, kind: input, shape index: {}]
  %s2 = inlined_call_operand.vmem [shape: f32[16,32], index: 2, kind: input, shape index: {}]
  %s3 = inlined_call_operand.vmem [shape: bf16[32,128], index: 3, kind: input, shape index: {}]
  %s4 = inlined_call_operand.vmem [shape: f32[1,128], index: 4, kind: input, shape index: {}]
  %s5 = inlined_call_operand.vmem [shape: f32[16,1], index: 5, kind: output, shape index: {0}]
  %s6 = inlined_call_operand.vmem [shape: s32[16,1], index: 6, kind: output, shape index: {1}]
  %7 = xla_tuple %s5, %s6
  %s8 = sld [smem:[#allocation0]]
  $region38: #{tpu_custom_call.1} parent=0
    _
  %s10 = ssub.s32 1, %s8
  %s11 = scalar_select 0, %s10, %s8
  // Predicated region
  $region2: #{tpu_custom_call.1} parent=0 // pred_check
    _
  $region3: #{tpu_custom_call.1} parent=0 // pred_check_branch
    %13 = sbr.rel (0) target = $region5
  $region4: #{tpu_custom_call.1} parent=0 // pred_region
    _
  $region5: #{tpu_custom_call.1} parent=0 // pred_fallthru
    _
  // Predicated region
  $region6: #{tpu_custom_call.1} parent=0 // pred_check
    _
  $region7: #{tpu_custom_call.1} parent=0 // pred_check_branch
    %15 = sbr.rel (0) target = $region9
  $region8: #{tpu_custom_call.1} parent=0 // pred_region
    _
  $region9: #{tpu_custom_call.1} parent=0 // pred_fallthru
    _
  // Predicated region
  $region10: #{tpu_custom_call.1} parent=0 // pred_check
    _
  $region11: #{tpu_custom_call.1} parent=0 // pred_check_branch
    %17 = sbr.rel (0) target = $region13
  $region12: #{tpu_custom_call.1} parent=0 // pred_region
    _
  $region13: #{tpu_custom_call.1} parent=0 // pred_fallthru
    _
  // Predicated region
  $region14: #{tpu_custom_call.1} parent=0 // pred_check
    _
  $region15: #{tpu_custom_call.1} parent=0 // pred_check_branch
    %19 = sbr.rel (0) target = $region17
  $region16: #{tpu_custom_call.1} parent=0 // pred_region
    _
  $region17: #{tpu_custom_call.1} parent=0 // pred_fallthru
    _
  // Predicated region
  $region18: #{tpu_custom_call.1} parent=0 // pred_check
    _
  $region19: #{tpu_custom_call.1} parent=0 // pred_check_branch
    %21 = sbr.rel (0) target = $region21
  $region20: #{tpu_custom_call.1} parent=0 // pred_region
    _
  $region21: #{tpu_custom_call.1} parent=0 // pred_fallthru
    _
  %v23 = vld [vmem:[%s2] sm:$0xff]
  %v24 = vld [vmem:[%s2 + $0x8] sm:$0xff]
  %v25 = vpack.c.bf16 %v24, %v23
  %v26 = vld [vmem:[%s3] sm:$0xf]
  %v27 = vld [vmem:[%s3 + $0x4] sm:$0xf]
  %v28 = vld [vmem:[%s3 + $0x8] sm:$0xf]
  %v29 = vld [vmem:[%s3 + $0xc] sm:$0xf]
  %v30 = vld [vmem:[%s4] sm:$0x1]
  %v32 = vlaneseq
  %v33 = vshrl.u32 %v32, 7
  %v34 = vsub.s32 0, %v33
  %v35 = vrot.slane %v30, %v34
  %v41 = vunpack.c.l.b16 %v26
  %v42 = vunpack.c.l.b16 %v27
  %v43 = vunpack.c.l.b16 %v28
  %v44 = vunpack.c.l.b16 %v29
  %v45 = vpack.c.b16 %v42, %v41
  %v46 = vpack.c.b16 %v44, %v43
  %vm49 = vcmask 261120
  %v51 = vsel %vm49, %v25, 0
  %53 = vmatprep.subr.bf16.mxu0 0
  %54 = vmatpush1.bf16.msra.mxu0 %v45
  %55 = vmatprep.subr.bf16.mxu0 0
  %56 = vmatpush1.bf16.msra.mxu0 %v46
  %57 = vmatprep.subr.bf16.mxu0 0
  %58 = vmatpush1.bf16.msra.mxu0 0
  %59 = vmatprep.subr.bf16.mxu0 0
  %60 = vmatpush1.bf16.msra.mxu0 0
  %61 = vmatprep.subr.bf16.mxu0 0
  %62 = vmatpush1.bf16.msra.mxu0 0
  %63 = vmatprep.subr.bf16.mxu0 0
  %64 = vmatpush1.bf16.msra.mxu0 0
  %65 = vmatprep.subr.bf16.mxu0 0
  %66 = vmatpush1.bf16.msra.mxu0 0
  %67 = vmatprep.subr.bf16.mxu0 0
  %68 = vmatpush1.bf16.msra.mxu0 0
  %69 = vmatprep.subr.bf16.mxu0 0
  %70 = vmatpush1.bf16.msra.mxu0 0
  %71 = vmatprep.subr.bf16.mxu0 0
  %72 = vmatpush1.bf16.msra.mxu0 0
  %73 = vmatprep.subr.bf16.mxu0 0
  %74 = vmatpush1.bf16.msra.mxu0 0
  %75 = vmatprep.subr.bf16.mxu0 0
  %76 = vmatpush1.bf16.msra.mxu0 0
  %77 = vmatprep.subr.bf16.mxu0 0
  %78 = vmatpush1.bf16.msra.mxu0 0
  %79 = vmatprep.subr.bf16.mxu0 0
  %80 = vmatpush1.bf16.msra.mxu0 0
  %81 = vmatprep.subr.bf16.mxu0 0
  %82 = vmatpush1.bf16.msra.mxu0 0
  %83 = vmatprep.subr.bf16.mxu0 0
  %84 = vmatpush1.bf16.msra.mxu0 0
  %85 = vmatprep.mubr.bf16.mxu0 0
  %86 = vmatmul.mubr.bf16.gmra.mrb[0].mxu0 %v51
  %v87 = vpop.f32.mrb[0].mxu0
  %v88 = vadd.f32 %v35, %v87
  %v89 = vpop.f32.mrb[0].mxu0
  %v90 = vpop.f32.mrb[0].mxu0
  %v91 = vadd.f32 %v35, %v90
  %v92 = vpop.f32.mrb[0].mxu0
  %93 = vdwg.mxu0
  %v94 = vld [vmem:[%s0] sm:$0xff]
  %v95 = vld [vmem:[%s0 + $0x8] sm:$0xff]
  %v96 = vld [vmem:[%s1] sm:$0xff]
  %v97 = vld [vmem:[%s1 + $0x8] sm:$0xff]
  %v98 = vlaneseq
  %v99 = vand.u32 %v98, 127
  %100 = vset.pattern.permute.xlu0 0
  %101 = vperm.xlu0 %100, %v94
  %v102 = vpop.permute.xlu0 %101
  %103 = vset.pattern.permute.xlu0 0
  %104 = vperm.xlu0 %103, %v95
  %v105 = vpop.permute.xlu0 %104
  %vm106 = vcmp.ge.s32.totalorder %v99, %v102
  %vm107 = vcmp.ge.s32.totalorder %v99, %v105
  %v108 = vsel %vm106, -10000.0, %v88
  %v109 = vsel %vm107, -10000.0, %v91
  %110 = vmax.xlane.f32.xlu0 %v108
  %v111 = vpop.xlane.xlu0 %110
  %112 = vmax.xlane.f32.xlu0 %v109
  %v113 = vpop.xlane.xlu0 %112
  %v114 = vsub.f32 %v108, %v111
  %v115 = vsub.f32 %v109, %v113
  %v116 = vmul.f32 %v114, 1.442695
  %v117 = vpow.pop %v116
  %v118 = vmul.f32 %v115, 1.442695
  %v119 = vpow.pop %v118
  %120 = vadd.xlane.f32.xlu0 %v117
  %v121 = vpop.xlane.xlu0 %120
  %122 = vadd.xlane.f32.xlu0 %v119
  %v123 = vpop.xlane.xlu0 %122
  %v124 = vlog2.pop %v121
  %v125 = vmul.f32 %v124, 0.6931472
  %v126 = vlog2.pop %v123
  %v127 = vmul.f32 %v126, 0.6931472
  %v128 = vadd.f32 %v125, %v111
  %v129 = vadd.f32 %v127, %v113
  %130 = vset.pattern.permute.xlu0 0
  %131 = vperm.xlu0 %130, %v96
  %v132 = vpop.permute.xlu0 %131
  %133 = vset.pattern.permute.xlu0 0
  %134 = vperm.xlu0 %133, %v97
  %v135 = vpop.permute.xlu0 %134
  %vm136 = vcmp.eq.s32.totalorder %v99, %v132
  %vm137 = vcmp.eq.s32.totalorder %v99, %v135
  %v138 = vsel %vm136, %v108, 0.0
  %v139 = vsel %vm137, %v109, 0.0
  %140 = vadd.xlane.f32.xlu0 %v138
  %v141 = vpop.xlane.xlu0 %140
  %142 = vadd.xlane.f32.xlu0 %v139
  %v143 = vpop.xlane.xlu0 %142
  %v144 = vsub.f32 %v128, %v141
  %v145 = vsub.f32 %v129, %v143
  %vm146 = vcmp.lt.s32.totalorder %v96, %v94
  %vm147 = vcmp.lt.s32.totalorder %v97, %v95
  %v148 = vsel %vm146, %v144, 0.0
  %v149 = vsel %vm147, %v145, 0.0
  %vm150 = vcmask 7168
  %151 = vst.msk [vmem:[%s5] sm:$0xff] %vm150, %v148
  %152 = vst.msk [vmem:[%s5 + $0x8] sm:$0xff] %vm150, %v149
  %vm153 = vcmp.eq.f32.partialorder %v108, %v111
  %vm154 = vcmp.eq.f32.partialorder %v109, %v113
  %v155 = vsel %vm153, %v99, 128
  %v156 = vsel %vm154, %v99, 128
  %v157 = vand.u32 %v155, 65535
  %v158 = vshra.s32 %v155, 16
  %v159 = vcvt.s32.f32 %v157
  %v160 = vcvt.s32.f32 %v158
  %161 = vmin.xlane.f32.xlu0 %v160
  %v162 = vpop.xlane.xlu0 %161
  %vm163 = vcmp.eq.f32.partialorder %v160, %v162
  %v164 = vsel %vm163, %v159, inf
  %165 = vmin.xlane.f32.xlu0 %v164
  %v166 = vpop.xlane.xlu0 %165
  %v167 = vcvt.f32.s32 %v166
  %v168 = vcvt.f32.s32 %v162
  %v169 = vshll.u32 %v168, 16
  %v170 = vadd.s32 %v169, %v167
  %v171 = vand.u32 %v156, 65535
  %v172 = vshra.s32 %v156, 16
  %v173 = vcvt.s32.f32 %v171
  %v174 = vcvt.s32.f32 %v172
  %175 = vmin.xlane.f32.xlu0 %v174
  %v176 = vpop.xlane.xlu0 %175
  %vm177 = vcmp.eq.f32.partialorder %v174, %v176
  %v178 = vsel %vm177, %v173, inf
  %179 = vmin.xlane.f32.xlu0 %v178
  %v180 = vpop.xlane.xlu0 %179
  %v181 = vcvt.f32.s32 %v180
  %v182 = vcvt.f32.s32 %v176
  %v183 = vshll.u32 %v182, 16
  %v184 = vadd.s32 %v183, %v181
  %v185 = vsub.s32 0, %v170
  %v186 = vsub.s32 0, %v184
  %187 = vst.msk [vmem:[%s6] sm:$0xff] %vm150, %v185
  %188 = vst.msk [vmem:[%s6 + $0x8] sm:$0xff] %vm150, %v186
  // Predicated region
  $region22: #{tpu_custom_call.1} parent=0 // pred_check
    _
  $region23: #{tpu_custom_call.1} parent=0 // pred_check_branch
    %190 = sbr.rel (0) target = $region25
  $region24: #{tpu_custom_call.1} parent=0 // pred_region
    _
  $region25: #{tpu_custom_call.1} parent=0 // pred_fallthru
    _
  // Predicated region
  $region26: #{tpu_custom_call.1} parent=0 // pred_check
    _
  $region27: #{tpu_custom_call.1} parent=0 // pred_check_branch
    %192 = sbr.rel (0) target = $region29
  $region28: #{tpu_custom_call.1} parent=0 // pred_region
    _
  $region29: #{tpu_custom_call.1} parent=0 // pred_fallthru
    _
  // Predicated region
  $region30: #{tpu_custom_call.1} parent=0 // pred_check
    _
  $region31: #{tpu_custom_call.1} parent=0 // pred_check_branch
    %194 = sbr.rel (0) target = $region33
  $region32: #{tpu_custom_call.1} parent=0 // pred_region
    _
  $region33: #{tpu_custom_call.1} parent=0 // pred_fallthru
    _
  // Predicated region
  $region34: #{tpu_custom_call.1} parent=0 // pred_check
    _
  $region35: #{tpu_custom_call.1} parent=0 // pred_check_branch
    %196 = sbr.rel (0) target = $region37
  $region36: #{tpu_custom_call.1} parent=0 // pred_region
    _
  $region37: #{tpu_custom_call.1} parent=0 // pred_fallthru
    _

</llo_original>
